<compile_context>
chip_gen: v7x
topology: tpu7x:2x2x1
jax: 0.10.0
libtpu: 0.0.40
codegen_flags: <defaults>
</compile_context>

<pallas_src>
import functools

import jax
import jax.numpy as jnp
from jax.experimental import pallas as pl
from jax.experimental.pallas import tpu as pltpu

LANE = 128
SUBLANE = 8


def _round_up(x, m):
    return (x + m - 1) // m * m


# ----------------------------------------------------------------------------- params
def init_params(key, input_size, hidden_sizes, output_size):
    """PyTorch-nn.Linear-style init; weights stored as (in, out) == W.T vs torch."""
    dims = [input_size] + list(hidden_sizes) + [output_size]
    weights, biases = [], []
    for i in range(len(dims) - 1):
        key, kw, kb = jax.random.split(key, 3)
        fan_in, fan_out = dims[i], dims[i + 1]
        bound = 1.0 / jnp.sqrt(jnp.float32(fan_in))
        weights.append(jax.random.uniform(kw, (fan_in, fan_out), jnp.float32, -bound, bound))
        biases.append(jax.random.uniform(kb, (fan_out,), jnp.float32, -bound, bound))
    return weights, biases


def pack_params(weights, biases, *, param_dtype=jnp.float32):
    """One-time pack of every Linear layer into a single lane-dense buffer.

    Returns packed of shape (L, D_PAD + 8, D_PAD) with
        packed[i, :in_i, :out_i] = W_i   (zero-padded elsewhere)
        packed[i, D_PAD,  :out_i] = b_i  (bias row; rows D_PAD+1.. are alignment padding)
    All casting happens here, never in the per-call path.
    """
    assert len(weights) == len(biases)
    dims = [weights[0].shape[0]] + [w.shape[1] for w in weights]
    d_pad = _round_up(max(dims), LANE)
    rows = d_pad + SUBLANE
    slabs = []
    for w, b in zip(weights, biases):
        in_i, out_i = w.shape
        slab = jnp.zeros((rows, d_pad), param_dtype)
        slab = slab.at[:in_i, :out_i].set(w.astype(param_dtype))
        slab = slab.at[d_pad, :out_i].set(b.astype(param_dtype))
        slabs.append(slab)
    return jnp.stack(slabs, axis=0)  # (L, rows, d_pad)


# ----------------------------------------------------------------------------- kernel
def make_mlp_kernel(n_layers, input_size, output_size, d_pad):
    """Fused MLP: Linear -> ReLU (hidden layers) ... Linear -> Tanh (last layer)."""

    def kernel(x_ref, p_ref, o_ref):
        h = x_ref[...].astype(jnp.float32)                      # (TM, input_size)
        for i in range(n_layers):
            kdim = input_size if i == 0 else d_pad              # static slice of weight rows
            w = p_ref[i, :kdim, :]                              # (kdim, d_pad)
            b = p_ref[i, d_pad:d_pad + 1, :].astype(jnp.float32)  # (1, d_pad) bias row
            # Cast activations to the param dtype at the MXU boundary (no-op for f32;
            # bf16 inputs with f32 accumulation if params were packed as bf16).
            h = jnp.dot(h.astype(w.dtype), w, preferred_element_type=jnp.float32) + b
            if i < n_layers - 1:
                h = jnp.maximum(h, 0.0)                         # ReLU on the VPU
        # Padded columns are exactly zero by construction; only the real outputs are stored.
        o_ref[...] = jnp.tanh(h[:, :output_size]).astype(o_ref.dtype)

    return kernel


# ----------------------------------------------------------------------------- wrapper
def basic_net_actor_forward(x, packed_params, *, input_size, output_size, block_m=128):
    """Fused forward pass.  x: (batch, input_size) f32; packed_params from pack_params."""
    batch = x.shape[0]
    n_layers, rows, d_pad = packed_params.shape
    tm = min(block_m, _round_up(batch, SUBLANE))
    grid = (pl.cdiv(batch, tm),)
    kernel = make_mlp_kernel(n_layers, input_size, output_size, d_pad)
    return pl.pallas_call(
        kernel,
        out_shape=jax.ShapeDtypeStruct((batch, output_size), jnp.float32),
        grid=grid,
        in_specs=[
            # Batch tile of activations (pipelined across grid steps).
            pl.BlockSpec((tm, input_size), lambda i: (i, 0)),
            # Whole packed parameter block; constant index_map -> VMEM-resident, no re-DMA.
            pl.BlockSpec((n_layers, rows, d_pad), lambda i: (0, 0, 0)),
        ],
        out_specs=pl.BlockSpec((tm, output_size), lambda i: (i, 0)),
        compiler_params=pltpu.CompilerParams(dimension_semantics=("parallel",)),
    )(x, packed_params)


# ----------------------------------------------------------------------------- reference
def reference_forward(x, weights, biases):
    h = x
    for i, (w, b) in enumerate(zip(weights, biases)):
        h = h @ w + b
        if i < len(weights) - 1:
            h = jnp.maximum(h, 0.0)
    return jnp.tanh(h)


if __name__ == "__main__":
    input_size, hidden_sizes, output_size = 16, [32, 32], 8

    key = jax.random.PRNGKey(0)
    key, kx_small, kx_big = jax.random.split(key, 3)
    weights, biases = init_params(key, input_size, hidden_sizes, output_size)

    # One-time packing (all casts hoisted here).  Use param_dtype=jnp.bfloat16 to halve
    # weight DMA bytes / feed the MXU natively on v5e (accumulation stays f32).
    packed = pack_params(weights, biases, param_dtype=jnp.float32)

    fwd = functools.partial(
        basic_net_actor_forward, input_size=input_size, output_size=output_size
    )

    # 1) Small, module-consistent shape (batch=2).
    x_small = jax.random.normal(kx_small, (2, input_size), jnp.float32)
    out_small = jax.block_until_ready(fwd(x_small, packed))
    ref_small = reference_forward(x_small, weights, biases)
    assert out_small.shape == (2, output_size)
    assert jnp.allclose(out_small, ref_small, atol=1e-5, rtol=1e-5), "mismatch (batch=2)"

    # 2) Batched shape (amortizes launch/DMA overhead; grid=(2,) parallel -> both TCs on v7x).
    x_big = jax.random.normal(kx_big, (256, input_size), jnp.float32)
    out_big = jax.block_until_ready(fwd(x_big, packed))
    ref_big = reference_forward(x_big, weights, biases)
    assert out_big.shape == (256, output_size)
    assert jnp.allclose(out_big, ref_big, atol=1e-5, rtol=1e-5), "mismatch (batch=256)"

    print("KERNEL_OK")
</pallas_src>

<mosaic_0001>
module attributes {stable_mosaic.version = 11 : i64} {
  func.func @kernel(%arg0: i32, %arg1: memref<8x16xf32, #tpu.memory_space<vmem>>, %arg2: memref<3x136x128xf32, #tpu.memory_space<vmem>>, %arg3: memref<8x8xf32, #tpu.memory_space<vmem>>) attributes {dimension_semantics = [#tpu.dimension_semantics<parallel>], iteration_bounds = array<i64: 1>, scalar_prefetch = 0 : i64, scratch_operands = 0 : i64, tpu.core_type = #tpu.core_type<tc>, window_params = [{transform_indices = @transform_0, window_bounds = array<i64: 8, 16>}, {pipeline_mode = #tpu.pipeline_mode<synchronous>, transform_indices = @transform_1, window_bounds = array<i64: 3, 136, 128>}, {transform_indices = @transform_2, window_bounds = array<i64: 8, 8>}]} {
    %c0 = arith.constant 0 : index
    %c0_0 = arith.constant 0 : index
    %0 = vector.load %arg1[%c0, %c0_0] : memref<8x16xf32, #tpu.memory_space<vmem>>, vector<8x16xf32>
    %c0_1 = arith.constant 0 : index
    %c0_2 = arith.constant 0 : index
    %c0_3 = arith.constant 0 : index
    %1 = vector.load %arg2[%c0_1, %c0_2, %c0_3] : memref<3x136x128xf32, #tpu.memory_space<vmem>>, vector<1x16x128xf32>
    %2 = vector.shape_cast %1 : vector<1x16x128xf32> to vector<16x128xf32>
    %c0_4 = arith.constant 0 : index
    %c128 = arith.constant 128 : index
    %c0_5 = arith.constant 0 : index
    %3 = vector.load %arg2[%c0_4, %c128, %c0_5] : memref<3x136x128xf32, #tpu.memory_space<vmem>>, vector<1x1x128xf32>
    %4 = vector.shape_cast %3 : vector<1x1x128xf32> to vector<1x128xf32>
    %cst = arith.constant dense<0.000000e+00> : vector<8x128xf32>
    %5 = tpu.matmul %0, %2, %cst {dimension_numbers = #tpu.dot_dimension_numbers<[1], [0], [0], [1], [0, 0, 1, 1], [], []>} : vector<8x16xf32>, vector<16x128xf32>, vector<8x128xf32> -> vector<8x128xf32>
    %6 = vector.broadcast %4 : vector<1x128xf32> to vector<8x128xf32>
    %7 = arith.addf %5, %6 : vector<8x128xf32>
    %cst_6 = arith.constant 0.000000e+00 : f32
    %8 = vector.broadcast %cst_6 : f32 to vector<8x128xf32>
    %9 = arith.maximumf %7, %8 : vector<8x128xf32>
    %c1 = arith.constant 1 : index
    %c0_7 = arith.constant 0 : index
    %c0_8 = arith.constant 0 : index
    %10 = vector.load %arg2[%c1, %c0_7, %c0_8] : memref<3x136x128xf32, #tpu.memory_space<vmem>>, vector<1x128x128xf32>
    %11 = vector.shape_cast %10 : vector<1x128x128xf32> to vector<128x128xf32>
    %c1_9 = arith.constant 1 : index
    %c128_10 = arith.constant 128 : index
    %c0_11 = arith.constant 0 : index
    %12 = vector.load %arg2[%c1_9, %c128_10, %c0_11] : memref<3x136x128xf32, #tpu.memory_space<vmem>>, vector<1x1x128xf32>
    %13 = vector.shape_cast %12 : vector<1x1x128xf32> to vector<1x128xf32>
    %cst_12 = arith.constant dense<0.000000e+00> : vector<8x128xf32>
    %14 = tpu.matmul %9, %11, %cst_12 {dimension_numbers = #tpu.dot_dimension_numbers<[1], [0], [0], [1], [0, 0, 1, 1], [], []>} : vector<8x128xf32>, vector<128x128xf32>, vector<8x128xf32> -> vector<8x128xf32>
    %15 = vector.broadcast %13 : vector<1x128xf32> to vector<8x128xf32>
    %16 = arith.addf %14, %15 : vector<8x128xf32>
    %cst_13 = arith.constant 0.000000e+00 : f32
    %17 = vector.broadcast %cst_13 : f32 to vector<8x128xf32>
    %18 = arith.maximumf %16, %17 : vector<8x128xf32>
    %c2 = arith.constant 2 : index
    %c0_14 = arith.constant 0 : index
    %c0_15 = arith.constant 0 : index
    %19 = vector.load %arg2[%c2, %c0_14, %c0_15] : memref<3x136x128xf32, #tpu.memory_space<vmem>>, vector<1x128x128xf32>
    %20 = vector.shape_cast %19 : vector<1x128x128xf32> to vector<128x128xf32>
    %c2_16 = arith.constant 2 : index
    %c128_17 = arith.constant 128 : index
    %c0_18 = arith.constant 0 : index
    %21 = vector.load %arg2[%c2_16, %c128_17, %c0_18] : memref<3x136x128xf32, #tpu.memory_space<vmem>>, vector<1x1x128xf32>
    %22 = vector.shape_cast %21 : vector<1x1x128xf32> to vector<1x128xf32>
    %cst_19 = arith.constant dense<0.000000e+00> : vector<8x128xf32>
    %23 = tpu.matmul %18, %20, %cst_19 {dimension_numbers = #tpu.dot_dimension_numbers<[1], [0], [0], [1], [0, 0, 1, 1], [], []>} : vector<8x128xf32>, vector<128x128xf32>, vector<8x128xf32> -> vector<8x128xf32>
    %24 = vector.broadcast %22 : vector<1x128xf32> to vector<8x128xf32>
    %25 = arith.addf %23, %24 : vector<8x128xf32>
    %26 = vector.extract_strided_slice %25 {offsets = [0, 0], sizes = [8, 8], strides = [1, 1]} : vector<8x128xf32> to vector<8x8xf32>
    %27 = math.tanh %26 : vector<8x8xf32>
    %c0_20 = arith.constant 0 : index
    %c0_21 = arith.constant 0 : index
    %28 = vector.load %arg3[%c0_20, %c0_21] : memref<8x8xf32, #tpu.memory_space<vmem>>, vector<8x8xf32>
    tpu.vector_store %arg3[%c0_20, %c0_21], %27 {strides = array<i32>} : memref<8x8xf32, #tpu.memory_space<vmem>>, vector<8x8xf32>,
    return
  }
  func.func @transform_0(%arg0: i32) -> (i32, i32) {
    %c0_i32 = arith.constant 0 : i32
    %c0_i32_0 = arith.constant 0 : i32
    return %arg0, %c0_i32 : i32, i32
  }
  func.func @transform_1(%arg0: i32) -> (i32, i32, i32) {
    %c0_i32 = arith.constant 0 : i32
    %c0_i32_0 = arith.constant 0 : i32
    %c0_i32_1 = arith.constant 0 : i32
    %c0_i32_2 = arith.constant 0 : i32
    return %c0_i32, %c0_i32_0, %c0_i32_1 : i32, i32, i32
  }
  func.func @transform_2(%arg0: i32) -> (i32, i32) {
    %c0_i32 = arith.constant 0 : i32
    %c0_i32_0 = arith.constant 0 : i32
    return %arg0, %c0_i32 : i32, i32
  }
}

</mosaic_0001>

<llo_original>
// kernel: tpu_custom_call.1
$region0: #{tpu_custom_call.1}
  #allocation0 [shape = 'u32[]', space=smem, size = 0x4, offset = 0x4, fixed_abs, tag = 'smem constant byte address 0x4 - core index']
  #allocation1 [shape = 'u32[144,128]{1,0:T(1,128)}', space=vmem, size = 0x12000, scoped, tag = 'internal scratch']
  %s0 = inlined_call_operand.hbm [shape: f32[2,16], index: 0, kind: input, shape index: {}]
  %s1 = inlined_call_operand.hbm [shape: f32[3,136,128], index: 1, kind: input, shape index: {}]
  %s2 = inlined_call_operand.hbm [shape: f32[2,8], index: 2, kind: output, shape index: {}]
  %s3 = sld [smem:[#allocation0]]
  $region26: #{tpu_custom_call.1} parent=0
    _
  %s5 = ssub.s32 1, %s3
  %s6 = scalar_select 0, %s5, %s3
  $region1: #{tpu_custom_call.1} parent=0
    #allocation2 [shape = 'u8[4096]{0}', space=vmem, size = 0x1000, scoped, tag = 'input window, operand 0, single buffered']
    #allocation3 [shape = 's32[1]{0}', space=sflag, size = 0x4, scoped, tag = 'scoped memory for tpu_custom_call.1']
    #allocation4 [shape = 's32[1]{0}', space=sflag, size = 0x4, scoped, tag = 'scoped memory for tpu_custom_call.1']
    #allocation5 [shape = 'u8[208896]{0}', space=vmem, size = 0x33000, scoped, tag = 'input window, operand 1, single buffered']
    #allocation6 [shape = 's32[1]{0}', space=sflag, size = 0x4, scoped, tag = 'scoped memory for tpu_custom_call.1']
    #allocation7 [shape = 'u8[4096]{0}', space=vmem, size = 0x1000, scoped, tag = 'output window, operand 0, single buffered']
    %7 = vsyncpa [#allocation3], 0
    %8 = vsyncpa [#allocation6], 0
    %9 = vsyncpa [#allocation4], 0
    // Predicated region
    $region2: #{tpu_custom_call.1} parent=1 // pred_check
      _
    $region3: #{tpu_custom_call.1} parent=1 // pred_check_branch
      %11 = sbr.rel (0) target = $region5
    $region4: #{tpu_custom_call.1} parent=1 // pred_region
      %s13 = ssub.s32 128, 32
      %14 = vsyncadd [#allocation3], %s13
      %s15 = sshll.u32 [#allocation2], 4
      %s16 = int_to_ptr.vmem [resolvable:$true] %s15
      %21 = dma.hbm_to_vmem [thread:$0]  %s0, 32, %s16, [#allocation3], 32, 32, 2
    $region5: #{tpu_custom_call.1} parent=1 // pred_fallthru
      _
    // Predicated region
    $region6: #{tpu_custom_call.1} parent=1 // pred_check
      _
    $region7: #{tpu_custom_call.1} parent=1 // pred_check_branch
      %23 = sbr.rel (0) target = $region9
    $region8: #{tpu_custom_call.1} parent=1 // pred_region
      %s25 = ssub.s32 6528, 6528
      %26 = vsyncadd [#allocation6], %s25
      %s27 = sshll.u32 [#allocation5], 4
      %s28 = int_to_ptr.vmem [resolvable:$true] %s27
      %33 = dma.hbm_to_vmem [thread:$0]  %s1, 6528, %s28, [#allocation6], 128, 128, 8
    $region9: #{tpu_custom_call.1} parent=1 // pred_fallthru
      _
    // Predicated region
    $region10: #{tpu_custom_call.1} parent=1 // pred_check
      _
    $region11: #{tpu_custom_call.1} parent=1 // pred_check_branch
      %35 = sbr.rel (0) target = $region13
    $region12: #{tpu_custom_call.1} parent=1 // pred_region
      %36 = dma.done [#allocation3], 128
    $region13: #{tpu_custom_call.1} parent=1 // pred_fallthru
      _
    // Predicated region
    $region14: #{tpu_custom_call.1} parent=1 // pred_check
      _
    $region15: #{tpu_custom_call.1} parent=1 // pred_check_branch
      %38 = sbr.rel (0) target = $region17
    $region16: #{tpu_custom_call.1} parent=1 // pred_region
      %39 = dma.done [#allocation6], 6528
    $region17: #{tpu_custom_call.1} parent=1 // pred_fallthru
      _
    %v40 = vld [vmem:[#allocation2] sm:$0xff]
    %v41 = vld [vmem:[#allocation5] sm:$0xff]
    %v42 = vld [vmem:[#allocation5 + $0x8] sm:$0xff]
    %v43 = vld [vmem:[#allocation5 + $0x80] sm:$0x1]
    %v44 = vlaneseq
    %v45 = vshrl.u32 %v44, 7
    %v46 = vsub.s32 0, %v45
    %v47 = vrot.slane %v43, %v46
    %vm48 = vcmask 130048
    %v50 = vsel %vm48, %v40, 0
    %52 = vmatprep.subr.mxu0 0.0
    %53 = vmatpush1.msra.mxu0 %v41
    %54 = vmatprep.subr.mxu0 0.0
    %55 = vmatpush1.msra.mxu0 %v42
    %56 = vmatprep.subr.mxu0 0.0
    %57 = vmatpush1.msra.mxu0 0.0
    %58 = vmatprep.subr.mxu0 0.0
    %59 = vmatpush1.msra.mxu0 0.0
    %60 = vmatprep.subr.mxu0 0.0
    %61 = vmatpush1.msra.mxu0 0.0
    %62 = vmatprep.subr.mxu0 0.0
    %63 = vmatpush1.msra.mxu0 0.0
    %64 = vmatprep.subr.mxu0 0.0
    %65 = vmatpush1.msra.mxu0 0.0
    %66 = vmatprep.subr.mxu0 0.0
    %67 = vmatpush1.msra.mxu0 0.0
    %68 = vmatprep.subr.mxu0 0.0
    %69 = vmatpush1.msra.mxu0 0.0
    %70 = vmatprep.subr.mxu0 0.0
    %71 = vmatpush1.msra.mxu0 0.0
    %72 = vmatprep.subr.mxu0 0.0
    %73 = vmatpush1.msra.mxu0 0.0
    %74 = vmatprep.subr.mxu0 0.0
    %75 = vmatpush1.msra.mxu0 0.0
    %76 = vmatprep.subr.mxu0 0.0
    %77 = vmatpush1.msra.mxu0 0.0
    %78 = vmatprep.subr.mxu0 0.0
    %79 = vmatpush1.msra.mxu0 0.0
    %80 = vmatprep.subr.mxu0 0.0
    %81 = vmatpush1.msra.mxu0 0.0
    %82 = vmatprep.subr.mxu0 0.0
    %83 = vmatpush1.msra.mxu0 0.0
    %84 = vmatprep.subr.mxu0 0.0
    %85 = vmatpush1.msra.mxu0 0.0
    %86 = vmatprep.subr.mxu0 0.0
    %87 = vmatpush1.msra.mxu0 0.0
    %88 = vmatprep.subr.mxu0 0.0
    %89 = vmatpush1.msra.mxu0 0.0
    %90 = vmatprep.subr.mxu0 0.0
    %91 = vmatpush1.msra.mxu0 0.0
    %92 = vmatprep.subr.mxu0 0.0
    %93 = vmatpush1.msra.mxu0 0.0
    %94 = vmatprep.subr.mxu0 0.0
    %95 = vmatpush1.msra.mxu0 0.0
    %96 = vmatprep.subr.mxu0 0.0
    %97 = vmatpush1.msra.mxu0 0.0
    %98 = vmatprep.subr.mxu0 0.0
    %99 = vmatpush1.msra.mxu0 0.0
    %100 = vmatprep.subr.mxu0 0.0
    %101 = vmatpush1.msra.mxu0 0.0
    %102 = vmatprep.subr.mxu0 0.0
    %103 = vmatpush1.msra.mxu0 0.0
    %104 = vmatprep.subr.mxu0 0.0
    %105 = vmatpush1.msra.mxu0 0.0
    %106 = vmatprep.subr.mxu0 0.0
    %107 = vmatpush1.msra.mxu0 0.0
    %108 = vmatprep.subr.mxu0 0.0
    %109 = vmatpush1.msra.mxu0 0.0
    %110 = vmatprep.subr.mxu0 0.0
    %111 = vmatpush1.msra.mxu0 0.0
    %112 = vmatprep.subr.mxu0 0.0
    %113 = vmatpush1.msra.mxu0 0.0
    %114 = vmatprep.subr.mxu0 0.0
    %115 = vmatpush1.msra.mxu0 0.0
    %116 = vmatprep.mubr.f32.mxu0 0.0
    %117 = vmatmul.mubr.f32.gmra.mrb[0].mxu0 %v50
    %v118 = vpop.f32.mrb[0].mxu0
    %v119 = vadd.f32 %v47, %v118
    %v120 = vpop.f32.mrb[0].mxu0
    %121 = vdwg.mxu0
    %v122 = vmax.f32 %v119, 0.0
    %s123 = scalar_lea.vmem [#allocation5], 136
    %v124 = vld [vmem:[%s123] sm:$0xff]
    %v125 = vld [vmem:[%s123 + $0x8] sm:$0xff]
    %v126 = vld [vmem:[%s123 + $0x10] sm:$0xff]
    %v127 = vld [vmem:[%s123 + $0x18] sm:$0xff]
    %v128 = vld [vmem:[%s123 + $0x20] sm:$0xff]
    %v129 = vld [vmem:[%s123 + $0x28] sm:$0xff]
    %v130 = vld [vmem:[%s123 + $0x30] sm:$0xff]
    %v131 = vld [vmem:[%s123 + $0x38] sm:$0xff]
    %v132 = vld [vmem:[%s123 + $0x40] sm:$0xff]
    %v133 = vld [vmem:[%s123 + $0x48] sm:$0xff]
    %v134 = vld [vmem:[%s123 + $0x50] sm:$0xff]
    %v135 = vld [vmem:[%s123 + $0x58] sm:$0xff]
    %v136 = vld [vmem:[%s123 + $0x60] sm:$0xff]
    %v137 = vld [vmem:[%s123 + $0x68] sm:$0xff]
    %v138 = vld [vmem:[%s123 + $0x70] sm:$0xff]
    %v139 = vld [vmem:[%s123 + $0x78] sm:$0xff]
    %v140 = vld [vmem:[%s123 + $0x80] sm:$0x1]
    %v141 = vlaneseq
    %v142 = vshrl.u32 %v141, 7
    %v143 = vsub.s32 0, %v142
    %v144 = vrot.slane %v140, %v143
    %145 = vmatprep.subr.mxu0 0.0
    %146 = vmatpush1.msra.mxu0 %v124
    %147 = vmatprep.subr.mxu0 0.0
    %148 = vmatpush1.msra.mxu0 %v125
    %149 = vmatprep.subr.mxu0 0.0
    %150 = vmatpush1.msra.mxu0 %v126
    %151 = vmatprep.subr.mxu0 0.0
    %152 = vmatpush1.msra.mxu0 %v127
    %153 = vmatprep.subr.mxu0 0.0
    %154 = vmatpush1.msra.mxu0 %v128
    %155 = vmatprep.subr.mxu0 0.0
    %156 = vmatpush1.msra.mxu0 %v129
    %157 = vmatprep.subr.mxu0 0.0
    %158 = vmatpush1.msra.mxu0 %v130
    %159 = vmatprep.subr.mxu0 0.0
    %160 = vmatpush1.msra.mxu0 %v131
    %161 = vmatprep.subr.mxu0 0.0
    %162 = vmatpush1.msra.mxu0 %v132
    %163 = vmatprep.subr.mxu0 0.0
    %164 = vmatpush1.msra.mxu0 %v133
    %165 = vmatprep.subr.mxu0 0.0
    %166 = vmatpush1.msra.mxu0 %v134
    %167 = vmatprep.subr.mxu0 0.0
    %168 = vmatpush1.msra.mxu0 %v135
    %169 = vmatprep.subr.mxu0 0.0
    %170 = vmatpush1.msra.mxu0 %v136
    %171 = vmatprep.subr.mxu0 0.0
    %172 = vmatpush1.msra.mxu0 %v137
    %173 = vmatprep.subr.mxu0 0.0
    %174 = vmatpush1.msra.mxu0 %v138
    %175 = vmatprep.subr.mxu0 0.0
    %176 = vmatpush1.msra.mxu0 %v139
    %177 = vmatprep.subr.mxu0 0.0
    %178 = vmatpush1.msra.mxu0 0.0
    %179 = vmatprep.subr.mxu0 0.0
    %180 = vmatpush1.msra.mxu0 0.0
    %181 = vmatprep.subr.mxu0 0.0
    %182 = vmatpush1.msra.mxu0 0.0
    %183 = vmatprep.subr.mxu0 0.0
    %184 = vmatpush1.msra.mxu0 0.0
    %185 = vmatprep.subr.mxu0 0.0
    %186 = vmatpush1.msra.mxu0 0.0
    %187 = vmatprep.subr.mxu0 0.0
    %188 = vmatpush1.msra.mxu0 0.0
    %189 = vmatprep.subr.mxu0 0.0
    %190 = vmatpush1.msra.mxu0 0.0
    %191 = vmatprep.subr.mxu0 0.0
    %192 = vmatpush1.msra.mxu0 0.0
    %193 = vmatprep.subr.mxu0 0.0
    %194 = vmatpush1.msra.mxu0 0.0
    %195 = vmatprep.subr.mxu0 0.0
    %196 = vmatpush1.msra.mxu0 0.0
    %197 = vmatprep.subr.mxu0 0.0
    %198 = vmatpush1.msra.mxu0 0.0
    %199 = vmatprep.subr.mxu0 0.0
    %200 = vmatpush1.msra.mxu0 0.0
    %201 = vmatprep.subr.mxu0 0.0
    %202 = vmatpush1.msra.mxu0 0.0
    %203 = vmatprep.subr.mxu0 0.0
    %204 = vmatpush1.msra.mxu0 0.0
    %205 = vmatprep.subr.mxu0 0.0
    %206 = vmatpush1.msra.mxu0 0.0
    %207 = vmatprep.subr.mxu0 0.0
    %208 = vmatpush1.msra.mxu0 0.0
    %209 = vmatprep.mubr.f32.mxu0 0.0
    %210 = vmatmul.mubr.f32.gmra.mrb[0].mxu0 %v122
    %v211 = vpop.f32.mrb[0].mxu0
    %v212 = vadd.f32 %v144, %v211
    %v213 = vpop.f32.mrb[0].mxu0
    %214 = vdwg.mxu0
    %v215 = vmax.f32 %v212, 0.0
    %s216 = scalar_lea.vmem [#allocation5], 272
    %v217 = vld [vmem:[%s216] sm:$0xff]
    %v218 = vld [vmem:[%s216 + $0x8] sm:$0xff]
    %v219 = vld [vmem:[%s216 + $0x10] sm:$0xff]
    %v220 = vld [vmem:[%s216 + $0x18] sm:$0xff]
    %v221 = vld [vmem:[%s216 + $0x20] sm:$0xff]
    %v222 = vld [vmem:[%s216 + $0x28] sm:$0xff]
    %v223 = vld [vmem:[%s216 + $0x30] sm:$0xff]
    %v224 = vld [vmem:[%s216 + $0x38] sm:$0xff]
    %v225 = vld [vmem:[%s216 + $0x40] sm:$0xff]
    %v226 = vld [vmem:[%s216 + $0x48] sm:$0xff]
    %v227 = vld [vmem:[%s216 + $0x50] sm:$0xff]
    %v228 = vld [vmem:[%s216 + $0x58] sm:$0xff]
    %v229 = vld [vmem:[%s216 + $0x60] sm:$0xff]
    %v230 = vld [vmem:[%s216 + $0x68] sm:$0xff]
    %v231 = vld [vmem:[%s216 + $0x70] sm:$0xff]
    %v232 = vld [vmem:[%s216 + $0x78] sm:$0xff]
    %v233 = vld [vmem:[%s216 + $0x80] sm:$0x1]
    %v234 = vlaneseq
    %v235 = vshrl.u32 %v234, 7
    %v236 = vsub.s32 0, %v235
    %v237 = vrot.slane %v233, %v236
    %238 = vmatprep.subr.mxu0 0.0
    %239 = vmatpush1.msra.mxu0 %v217
    %240 = vmatprep.subr.mxu0 0.0
    %241 = vmatpush1.msra.mxu0 %v218
    %242 = vmatprep.subr.mxu0 0.0
    %243 = vmatpush1.msra.mxu0 %v219
    %244 = vmatprep.subr.mxu0 0.0
    %245 = vmatpush1.msra.mxu0 %v220
    %246 = vmatprep.subr.mxu0 0.0
    %247 = vmatpush1.msra.mxu0 %v221
    %248 = vmatprep.subr.mxu0 0.0
    %249 = vmatpush1.msra.mxu0 %v222
    %250 = vmatprep.subr.mxu0 0.0
    %251 = vmatpush1.msra.mxu0 %v223
    %252 = vmatprep.subr.mxu0 0.0
    %253 = vmatpush1.msra.mxu0 %v224
    %254 = vmatprep.subr.mxu0 0.0
    %255 = vmatpush1.msra.mxu0 %v225
    %256 = vmatprep.subr.mxu0 0.0
    %257 = vmatpush1.msra.mxu0 %v226
    %258 = vmatprep.subr.mxu0 0.0
    %259 = vmatpush1.msra.mxu0 %v227
    %260 = vmatprep.subr.mxu0 0.0
    %261 = vmatpush1.msra.mxu0 %v228
    %262 = vmatprep.subr.mxu0 0.0
    %263 = vmatpush1.msra.mxu0 %v229
    %264 = vmatprep.subr.mxu0 0.0
    %265 = vmatpush1.msra.mxu0 %v230
    %266 = vmatprep.subr.mxu0 0.0
    %267 = vmatpush1.msra.mxu0 %v231
    %268 = vmatprep.subr.mxu0 0.0
    %269 = vmatpush1.msra.mxu0 %v232
    %270 = vmatprep.subr.mxu0 0.0
    %271 = vmatpush1.msra.mxu0 0.0
    %272 = vmatprep.subr.mxu0 0.0
    %273 = vmatpush1.msra.mxu0 0.0
    %274 = vmatprep.subr.mxu0 0.0
    %275 = vmatpush1.msra.mxu0 0.0
    %276 = vmatprep.subr.mxu0 0.0
    %277 = vmatpush1.msra.mxu0 0.0
    %278 = vmatprep.subr.mxu0 0.0
    %279 = vmatpush1.msra.mxu0 0.0
    %280 = vmatprep.subr.mxu0 0.0
    %281 = vmatpush1.msra.mxu0 0.0
    %282 = vmatprep.subr.mxu0 0.0
    %283 = vmatpush1.msra.mxu0 0.0
    %284 = vmatprep.subr.mxu0 0.0
    %285 = vmatpush1.msra.mxu0 0.0
    %286 = vmatprep.subr.mxu0 0.0
    %287 = vmatpush1.msra.mxu0 0.0
    %288 = vmatprep.subr.mxu0 0.0
    %289 = vmatpush1.msra.mxu0 0.0
    %290 = vmatprep.subr.mxu0 0.0
    %291 = vmatpush1.msra.mxu0 0.0
    %292 = vmatprep.subr.mxu0 0.0
    %293 = vmatpush1.msra.mxu0 0.0
    %294 = vmatprep.subr.mxu0 0.0
    %295 = vmatpush1.msra.mxu0 0.0
    %296 = vmatprep.subr.mxu0 0.0
    %297 = vmatpush1.msra.mxu0 0.0
    %298 = vmatprep.subr.mxu0 0.0
    %299 = vmatpush1.msra.mxu0 0.0
    %300 = vmatprep.subr.mxu0 0.0
    %301 = vmatpush1.msra.mxu0 0.0
    %302 = vmatprep.mubr.f32.mxu0 0.0
    %303 = vmatmul.mubr.f32.gmra.mrb[0].mxu0 %v215
    %v304 = vpop.f32.mrb[0].mxu0
    %v305 = vadd.f32 %v237, %v304
    %v306 = vpop.f32.mrb[0].mxu0
    %307 = vdwg.mxu0
    %v308 = vtanh.pop %v305
    %vm309 = vcmask 64512
    %310 = vst.msk [vmem:[#allocation7] sm:$0xff] %vm309, %v308
    // Predicated region
    $region18: #{tpu_custom_call.1} parent=1 // pred_check
      _
    $region19: #{tpu_custom_call.1} parent=1 // pred_check_branch
      %312 = sbr.rel (0) target = $region21
    $region20: #{tpu_custom_call.1} parent=1 // pred_region
      %s314 = ssub.s32 128, 32
      %315 = vsyncadd [#allocation4], %s314
      %s316 = sshll.u32 [#allocation7], 4
      %s317 = int_to_ptr.vmem [resolvable:$true] %s316
      %322 = dma.vmem_to_hbm [thread:$0]  %s317, 32, %s2, [#allocation4], 32, 32, 2
    $region21: #{tpu_custom_call.1} parent=1 // pred_fallthru
      _
    // Predicated region
    $region22: #{tpu_custom_call.1} parent=1 // pred_check
      _
    $region23: #{tpu_custom_call.1} parent=1 // pred_check_branch
      %324 = sbr.rel (0) target = $region25
    $region24: #{tpu_custom_call.1} parent=1 // pred_region
      %325 = dma.done [#allocation4], 128
    $region25: #{tpu_custom_call.1} parent=1 // pred_fallthru
      _
    %326 = vsyncpa [#allocation3], 1
    %327 = vsyncpa [#allocation6], 1
    %328 = vsyncpa [#allocation4], 1

</llo_original>
